<compile_context>
chip_gen: v7x
topology: tpu7x:2x2x1
jax: 0.10.0
libtpu: 0.0.40
codegen_flags: <defaults>
</compile_context>

<pallas_src>
import jax
import jax.numpy as jnp
from jax.experimental import pallas as pl
from jax.experimental.pallas import tpu as pltpu

NUM_CLASSES = 61
HID_PAD = 1024      # 1000 -> 1024
GATE_HID_PAD = 128  # 100  -> 128
GATE_OUT_PAD = 128  # 3    -> 128
CLS_PAD = 128       # 61   -> 128
NEG_INF = -1e30     # bias for padded gate logits -> softmax prob exactly 0


# ----------------------------------------------------------------------------
# Kernel 1: global average pool. Input re-laid-out to (B, H*W, C) so the
# 2048-wide channel dim is on the 128-lane axis; reduce over sublanes.
# ----------------------------------------------------------------------------
def _pool_kernel(x_ref, o_ref):
    o_ref[...] = jnp.mean(x_ref[...], axis=1)


def global_avg_pool(x):
    B, C, H, W = x.shape
    xr = jnp.transpose(x.reshape(B, C, H * W), (0, 2, 1))  # (B, HW, C)
    return pl.pallas_call(
        _pool_kernel,
        out_shape=jax.ShapeDtypeStruct((B, C), x.dtype),
        in_specs=[pl.BlockSpec((B, H * W, C), lambda: (0, 0, 0))],
        out_specs=pl.BlockSpec((B, C), lambda: (0, 0)),
    )(xr)


# ----------------------------------------------------------------------------
# Kernel 2: fused expert branches.
#   grid = (3 experts, K-tiles of the 2048 input dim)
#   h_acc (VMEM scratch) accumulates feature @ W1_e over K-tiles in f32;
#   at the last K-tile we apply bias+ReLU and do the 1024x1024 second matmul,
#   writing the (B, 1024) expert output block. Weights stream as bf16.
# ----------------------------------------------------------------------------
def _experts_kernel(x_ref, w1_ref, b1_ref, w2_ref, b2_ref, o_ref, h_acc):
    k = pl.program_id(1)

    @pl.when(k == 0)
    def _():
        h_acc[...] = jnp.zeros_like(h_acc)

    h_acc[...] += jnp.dot(x_ref[...].astype(jnp.bfloat16), w1_ref[...],
                          preferred_element_type=jnp.float32)

    @pl.when(k == pl.num_programs(1) - 1)
    def _():
        h = jnp.maximum(h_acc[...] + b1_ref[...], 0.0)     # Dropout = id (eval)
        o_ref[...] = (jnp.dot(h.astype(jnp.bfloat16), w2_ref[...],
                              preferred_element_type=jnp.float32)
                      + b2_ref[...]).astype(o_ref.dtype)


def experts_forward(feature, w1s, b1s, w2s, b2s, *, tk=512):
    B, K = feature.shape
    E, _, H = w1s.shape
    _, _, N = w2s.shape
    assert K % tk == 0, (K, tk)
    kt = K // tk
    return pl.pallas_call(
        _experts_kernel,
        out_shape=jax.ShapeDtypeStruct((E, B, N), jnp.float32),
        grid_spec=pltpu.PrefetchScalarGridSpec(
            num_scalar_prefetch=0,
            grid=(E, kt),
            in_specs=[
                pl.BlockSpec((B, tk), lambda e, k: (0, k)),
                pl.BlockSpec((None, tk, H), lambda e, k: (e, k, 0)),
                pl.BlockSpec((None, 1, H), lambda e, k: (e, 0, 0)),
                pl.BlockSpec((None, H, N), lambda e, k: (e, 0, 0)),
                pl.BlockSpec((None, 1, N), lambda e, k: (e, 0, 0)),
            ],
            out_specs=pl.BlockSpec((None, B, N), lambda e, k: (e, 0, 0)),
            scratch_shapes=[pltpu.VMEM((B, H), jnp.float32)],
        ),
        compiler_params=pltpu.CompilerParams(
            dimension_semantics=("parallel", "arbitrary")),
    )(feature, w1s, b1s, w2s, b2s)


# ----------------------------------------------------------------------------
# Kernel 3: fused gate (2048->100->3 + softmax), expert mixture, classifier.
# Padded gate-logit lanes carry a -1e30 bias -> softmax prob exactly 0.
# ----------------------------------------------------------------------------
def _gate_mix_cls_kernel(feat_ref, wg1_ref, bg1_ref, wg2_ref, bg2_ref,
                         eo_ref, wc_ref, bc_ref, o_ref):
    xb = feat_ref[...].astype(jnp.bfloat16)

    hg = jnp.dot(xb, wg1_ref[...], preferred_element_type=jnp.float32) + bg1_ref[...]
    hg = jnp.maximum(hg, 0.0)
    logits = jnp.dot(hg.astype(jnp.bfloat16), wg2_ref[...],
                     preferred_element_type=jnp.float32) + bg2_ref[...]
    logits = logits - jnp.max(logits, axis=-1, keepdims=True)
    p = jnp.exp(logits)
    p = p * pl.reciprocal(jnp.sum(p, axis=-1, keepdims=True))   # softmax (B, 128)

    # torch.stack([fc1,fc2,fc3], -1) * gate.unsqueeze(1), summed over last axis
    mixed = (eo_ref[0] * p[:, 0:1]
             + eo_ref[1] * p[:, 1:2]
             + eo_ref[2] * p[:, 2:3])                           # (B, 1024)

    h = jnp.maximum(mixed, 0.0)                                 # classifier ReLU
    out = jnp.dot(h.astype(jnp.bfloat16), wc_ref[...],
                  preferred_element_type=jnp.float32) + bc_ref[...]
    o_ref[...] = out.astype(o_ref.dtype)


def gate_mix_classify(feature, wg1, bg1, wg2, bg2, expert_out, wc, bc):
    B, K = feature.shape
    GH = wg1.shape[1]
    GO = wg2.shape[1]
    E, _, N = expert_out.shape
    NC = wc.shape[1]
    return pl.pallas_call(
        _gate_mix_cls_kernel,
        out_shape=jax.ShapeDtypeStruct((B, NC), jnp.float32),
        in_specs=[
            pl.BlockSpec((B, K), lambda: (0, 0)),
            pl.BlockSpec((K, GH), lambda: (0, 0)),
            pl.BlockSpec((1, GH), lambda: (0, 0)),
            pl.BlockSpec((GH, GO), lambda: (0, 0)),
            pl.BlockSpec((1, GO), lambda: (0, 0)),
            pl.BlockSpec((E, B, N), lambda: (0, 0, 0)),
            pl.BlockSpec((N, NC), lambda: (0, 0)),
            pl.BlockSpec((1, NC), lambda: (0, 0)),
        ],
        out_specs=pl.BlockSpec((B, NC), lambda: (0, 0)),
    )(feature, wg1, bg1, wg2, bg2, expert_out, wc, bc)


# ----------------------------------------------------------------------------
# Parameters: torch-style f32 init, then pad/stack and cast weights to bf16.
# ----------------------------------------------------------------------------
def init_params(key):
    def lin_init(k, fan_in, fan_out):
        k1, k2 = jax.random.split(k)
        bound = 1.0 / jnp.sqrt(jnp.float32(fan_in))
        w = jax.random.uniform(k1, (fan_in, fan_out), jnp.float32, -bound, bound)
        b = jax.random.uniform(k2, (fan_out,), jnp.float32, -bound, bound)
        return w, b

    keys = jax.random.split(key, 9)
    raw = {}
    raw["gate_w1"], raw["gate_b1"] = lin_init(keys[0], 2048, 100)
    raw["gate_w2"], raw["gate_b2"] = lin_init(keys[1], 100, 3)
    raw["exp_w1"], raw["exp_b1"], raw["exp_w2"], raw["exp_b2"] = [], [], [], []
    for i in range(3):
        w1, b1 = lin_init(keys[2 + 2 * i], 2048, 1000)
        w2, b2 = lin_init(keys[3 + 2 * i], 1000, 1000)
        raw["exp_w1"].append(w1); raw["exp_b1"].append(b1)
        raw["exp_w2"].append(w2); raw["exp_b2"].append(b2)
    raw["cls_w"], raw["cls_b"] = lin_init(keys[8], 1000, NUM_CLASSES)
    return raw


def _pad_2d(a, rows, cols):
    return jnp.zeros((rows, cols), a.dtype).at[:a.shape[0], :a.shape[1]].set(a)


def _pad_1d(a, n, fill=0.0):
    return jnp.full((n,), fill, a.dtype).at[:a.shape[0]].set(a)


def prepare_params(raw):
    p = {}
    # gate: 2048 -> 100(->128) -> 3(->128); padded logit lanes get -1e30 bias
    p["gate_w1"] = _pad_2d(raw["gate_w1"], 2048, GATE_HID_PAD).astype(jnp.bfloat16)
    p["gate_b1"] = _pad_1d(raw["gate_b1"], GATE_HID_PAD).reshape(1, GATE_HID_PAD)
    p["gate_w2"] = _pad_2d(raw["gate_w2"], GATE_HID_PAD, GATE_OUT_PAD).astype(jnp.bfloat16)
    p["gate_b2"] = _pad_1d(raw["gate_b2"], GATE_OUT_PAD, fill=NEG_INF).reshape(1, GATE_OUT_PAD)
    # experts: stacked (3, 2048, 1024) / (3, 1024, 1024), zero padding
    p["exp_w1"] = jnp.stack([_pad_2d(w, 2048, HID_PAD)
                             for w in raw["exp_w1"]]).astype(jnp.bfloat16)
    p["exp_b1"] = jnp.stack([_pad_1d(b, HID_PAD)
                             for b in raw["exp_b1"]]).reshape(3, 1, HID_PAD)
    p["exp_w2"] = jnp.stack([_pad_2d(w, HID_PAD, HID_PAD)
                             for w in raw["exp_w2"]]).astype(jnp.bfloat16)
    p["exp_b2"] = jnp.stack([_pad_1d(b, HID_PAD)
                             for b in raw["exp_b2"]]).reshape(3, 1, HID_PAD)
    # classifier: 1000(->1024) -> 61(->128)
    p["cls_w"] = _pad_2d(raw["cls_w"], HID_PAD, CLS_PAD).astype(jnp.bfloat16)
    p["cls_b"] = _pad_1d(raw["cls_b"], CLS_PAD).reshape(1, CLS_PAD)
    return p


# ----------------------------------------------------------------------------
# Forward pass (eval mode) and a pure-JAX reference for sanity checking.
# ----------------------------------------------------------------------------
def gate_model_forward(x, params):
    feature = global_avg_pool(x)                                   # (B, 2048) f32
    expert_out = experts_forward(feature,
                                 params["exp_w1"], params["exp_b1"],
                                 params["exp_w2"], params["exp_b2"],
                                 tk=512)                           # (3, B, 1024)
    out = gate_mix_classify(feature,
                            params["gate_w1"], params["gate_b1"],
                            params["gate_w2"], params["gate_b2"],
                            expert_out,
                            params["cls_w"], params["cls_b"])      # (B, 128)
    return out[:, :NUM_CLASSES]                                    # (B, 61)


def reference_forward(x, params):
    feature = x.mean((-1, -2))
    fb = feature.astype(jnp.bfloat16)
    hg = jnp.maximum(jnp.dot(fb, params["gate_w1"],
                             preferred_element_type=jnp.float32) + params["gate_b1"], 0.0)
    logits = jnp.dot(hg.astype(jnp.bfloat16), params["gate_w2"],
                     preferred_element_type=jnp.float32) + params["gate_b2"]
    p = jax.nn.softmax(logits, axis=-1)
    outs = []
    for e in range(3):
        h = jnp.maximum(jnp.dot(fb, params["exp_w1"][e],
                                preferred_element_type=jnp.float32) + params["exp_b1"][e], 0.0)
        outs.append(jnp.dot(h.astype(jnp.bfloat16), params["exp_w2"][e],
                            preferred_element_type=jnp.float32) + params["exp_b2"][e])
    mixed = outs[0] * p[:, 0:1] + outs[1] * p[:, 1:2] + outs[2] * p[:, 2:3]
    h = jnp.maximum(mixed, 0.0)
    out = jnp.dot(h.astype(jnp.bfloat16), params["cls_w"],
                  preferred_element_type=jnp.float32) + params["cls_b"]
    return out[:, :NUM_CLASSES]


if __name__ == "__main__":
    key = jax.random.PRNGKey(0)
    pkey, xkey = jax.random.split(key)
    params = prepare_params(init_params(pkey))

    # Post-backbone feature map (NCHW): batch=2, channels=2048, spatial 4x4
    x = jax.random.normal(xkey, (2, 2048, 4, 4), dtype=jnp.float32)

    out = gate_model_forward(x, params)
    out = jax.block_until_ready(out)
    assert out.shape == (2, NUM_CLASSES), out.shape
    assert bool(jnp.all(jnp.isfinite(out)))

    ref = jax.block_until_ready(reference_forward(x, params))
    assert bool(jnp.allclose(out, ref, atol=1e-2, rtol=1e-2))
    print("KERNEL_OK")
</pallas_src>

<mosaic_0001>
module attributes {stable_mosaic.version = 11 : i64} {
  func.func @_pool_kernel(%arg0: memref<2x16x2048xf32, #tpu.memory_space<vmem>>, %arg1: memref<2x2048xf32, #tpu.memory_space<vmem>>) attributes {dimension_semantics = [], scalar_prefetch = 0 : i64, scratch_operands = 0 : i64, tpu.core_type = #tpu.core_type<tc>} {
    %c0 = arith.constant 0 : index
    %c0_0 = arith.constant 0 : index
    %c0_1 = arith.constant 0 : index
    %0 = vector.load %arg0[%c0, %c0_0, %c0_1] : memref<2x16x2048xf32, #tpu.memory_space<vmem>>, vector<2x16x2048xf32>
    %cst = arith.constant dense<0.000000e+00> : vector<2x2048xf32>
    %1 = vector.multi_reduction <add>, %0, %cst [1] : vector<2x16x2048xf32> to vector<2x2048xf32>
    %cst_2 = arith.constant 1.600000e+01 : f32
    %2 = vector.broadcast %cst_2 : f32 to vector<2x2048xf32>
    %3 = arith.divf %1, %2 : vector<2x2048xf32>
    %c0_3 = arith.constant 0 : index
    %c0_4 = arith.constant 0 : index
    %4 = vector.load %arg1[%c0_3, %c0_4] : memref<2x2048xf32, #tpu.memory_space<vmem>>, vector<2x2048xf32>
    tpu.vector_store %arg1[%c0_3, %c0_4], %3 {strides = array<i32>} : memref<2x2048xf32, #tpu.memory_space<vmem>>, vector<2x2048xf32>,
    return
  }
}

</mosaic_0001>

<llo_original>
// kernel: tpu_custom_call.1
$region0: #{tpu_custom_call.1}
  #allocation0 [shape = 'u32[]', space=smem, size = 0x4, offset = 0x4, fixed_abs, tag = 'smem constant byte address 0x4 - core index']
  #allocation1 [shape = 'u32[144,128]{1,0:T(1,128)}', space=vmem, size = 0x12000, scoped, tag = 'internal scratch']
  %s0 = inlined_call_operand.hbm [shape: f32[2,16,2048], index: 0, kind: input, shape index: {}]
  %s1 = inlined_call_operand.hbm [shape: f32[2,2048], index: 1, kind: output, shape index: {}]
  %s2 = sld [smem:[#allocation0]]
  $region18: #{tpu_custom_call.1} parent=0
    _
  %s4 = ssub.s32 1, %s2
  %s5 = scalar_select 0, %s4, %s2
  $region1: #{tpu_custom_call.1} parent=0
    #allocation2 [shape = 'u8[262144]{0}', space=vmem, size = 0x40000, scoped, tag = 'input window, operand 0, single buffered']
    #allocation3 [shape = 's32[1]{0}', space=sflag, size = 0x4, scoped, tag = 'scoped memory for tpu_custom_call.1']
    #allocation4 [shape = 's32[1]{0}', space=sflag, size = 0x4, scoped, tag = 'scoped memory for tpu_custom_call.1']
    #allocation5 [shape = 'u8[16384]{0}', space=vmem, size = 0x4000, scoped, tag = 'output window, operand 0, single buffered']
    %6 = vsyncpa [#allocation3], 0
    %7 = vsyncpa [#allocation4], 0
    // Predicated region
    $region2: #{tpu_custom_call.1} parent=1 // pred_check
      _
    $region3: #{tpu_custom_call.1} parent=1 // pred_check_branch
      %9 = sbr.rel (0) target = $region5
    $region4: #{tpu_custom_call.1} parent=1 // pred_region
      %s11 = ssub.s32 8192, 8192
      %12 = vsyncadd [#allocation3], %s11
      %s13 = sshll.u32 [#allocation2], 4
      %s14 = int_to_ptr.vmem [resolvable:$true] %s13
      %19 = dma.hbm_to_vmem [thread:$0]  %s0, 8192, %s14, [#allocation3], 2048, 2048, 128
    $region5: #{tpu_custom_call.1} parent=1 // pred_fallthru
      _
    // Predicated region
    $region6: #{tpu_custom_call.1} parent=1 // pred_check
      _
    $region7: #{tpu_custom_call.1} parent=1 // pred_check_branch
      %21 = sbr.rel (0) target = $region9
    $region8: #{tpu_custom_call.1} parent=1 // pred_region
      %22 = dma.done [#allocation3], 8192
    $region9: #{tpu_custom_call.1} parent=1 // pred_fallthru
      _
    %v23 = vld [vmem:[#allocation2] sm:$0xff]
    %v24 = vld [vmem:[#allocation2 + $0x8] sm:$0xff]
    %v25 = vld [vmem:[#allocation2 + $0x10] sm:$0xff]
    %v26 = vld [vmem:[#allocation2 + $0x18] sm:$0xff]
    %v27 = vld [vmem:[#allocation2 + $0x20] sm:$0xff]
    %v28 = vld [vmem:[#allocation2 + $0x28] sm:$0xff]
    %v29 = vld [vmem:[#allocation2 + $0x30] sm:$0xff]
    %v30 = vld [vmem:[#allocation2 + $0x38] sm:$0xff]
    %v31 = vld [vmem:[#allocation2 + $0x40] sm:$0xff]
    %v32 = vld [vmem:[#allocation2 + $0x48] sm:$0xff]
    %v33 = vld [vmem:[#allocation2 + $0x50] sm:$0xff]
    %v34 = vld [vmem:[#allocation2 + $0x58] sm:$0xff]
    %v35 = vld [vmem:[#allocation2 + $0x60] sm:$0xff]
    %v36 = vld [vmem:[#allocation2 + $0x68] sm:$0xff]
    %v37 = vld [vmem:[#allocation2 + $0x70] sm:$0xff]
    %v38 = vld [vmem:[#allocation2 + $0x78] sm:$0xff]
    %v39 = vld [vmem:[#allocation2 + $0x80] sm:$0xff]
    %v40 = vld [vmem:[#allocation2 + $0x88] sm:$0xff]
    %v41 = vld [vmem:[#allocation2 + $0x90] sm:$0xff]
    %v42 = vld [vmem:[#allocation2 + $0x98] sm:$0xff]
    %v43 = vld [vmem:[#allocation2 + $0xa0] sm:$0xff]
    %v44 = vld [vmem:[#allocation2 + $0xa8] sm:$0xff]
    %v45 = vld [vmem:[#allocation2 + $0xb0] sm:$0xff]
    %v46 = vld [vmem:[#allocation2 + $0xb8] sm:$0xff]
    %v47 = vld [vmem:[#allocation2 + $0xc0] sm:$0xff]
    %v48 = vld [vmem:[#allocation2 + $0xc8] sm:$0xff]
    %v49 = vld [vmem:[#allocation2 + $0xd0] sm:$0xff]
    %v50 = vld [vmem:[#allocation2 + $0xd8] sm:$0xff]
    %v51 = vld [vmem:[#allocation2 + $0xe0] sm:$0xff]
    %v52 = vld [vmem:[#allocation2 + $0xe8] sm:$0xff]
    %v53 = vld [vmem:[#allocation2 + $0xf0] sm:$0xff]
    %v54 = vld [vmem:[#allocation2 + $0xf8] sm:$0xff]
    %v55 = vld [vmem:[#allocation2 + $0x100] sm:$0xff]
    %v56 = vld [vmem:[#allocation2 + $0x108] sm:$0xff]
    %v57 = vld [vmem:[#allocation2 + $0x110] sm:$0xff]
    %v58 = vld [vmem:[#allocation2 + $0x118] sm:$0xff]
    %v59 = vld [vmem:[#allocation2 + $0x120] sm:$0xff]
    %v60 = vld [vmem:[#allocation2 + $0x128] sm:$0xff]
    %v61 = vld [vmem:[#allocation2 + $0x130] sm:$0xff]
    %v62 = vld [vmem:[#allocation2 + $0x138] sm:$0xff]
    %v63 = vld [vmem:[#allocation2 + $0x140] sm:$0xff]
    %v64 = vld [vmem:[#allocation2 + $0x148] sm:$0xff]
    %v65 = vld [vmem:[#allocation2 + $0x150] sm:$0xff]
    %v66 = vld [vmem:[#allocation2 + $0x158] sm:$0xff]
    %v67 = vld [vmem:[#allocation2 + $0x160] sm:$0xff]
    %v68 = vld [vmem:[#allocation2 + $0x168] sm:$0xff]
    %v69 = vld [vmem:[#allocation2 + $0x170] sm:$0xff]
    %v70 = vld [vmem:[#allocation2 + $0x178] sm:$0xff]
    %v71 = vld [vmem:[#allocation2 + $0x180] sm:$0xff]
    %v72 = vld [vmem:[#allocation2 + $0x188] sm:$0xff]
    %v73 = vld [vmem:[#allocation2 + $0x190] sm:$0xff]
    %v74 = vld [vmem:[#allocation2 + $0x198] sm:$0xff]
    %v75 = vld [vmem:[#allocation2 + $0x1a0] sm:$0xff]
    %v76 = vld [vmem:[#allocation2 + $0x1a8] sm:$0xff]
    %v77 = vld [vmem:[#allocation2 + $0x1b0] sm:$0xff]
    %v78 = vld [vmem:[#allocation2 + $0x1b8] sm:$0xff]
    %v79 = vld [vmem:[#allocation2 + $0x1c0] sm:$0xff]
    %v80 = vld [vmem:[#allocation2 + $0x1c8] sm:$0xff]
    %v81 = vld [vmem:[#allocation2 + $0x1d0] sm:$0xff]
    %v82 = vld [vmem:[#allocation2 + $0x1d8] sm:$0xff]
    %v83 = vld [vmem:[#allocation2 + $0x1e0] sm:$0xff]
    %v84 = vld [vmem:[#allocation2 + $0x1e8] sm:$0xff]
    %v85 = vld [vmem:[#allocation2 + $0x1f0] sm:$0xff]
    %v86 = vld [vmem:[#allocation2 + $0x1f8] sm:$0xff]
    %v87 = vadd.f32 %v23, %v39
    %v88 = vrot.slane %v87, 4
    %v89 = vadd.f32 %v87, %v88
    %v90 = vrot.slane %v89, 2
    %v91 = vadd.f32 %v89, %v90
    %v92 = vrot.slane %v91, 1
    %v93 = vadd.f32 %v91, %v92
    %v94 = vadd.f32 %v24, %v40
    %v95 = vrot.slane %v94, 4
    %v96 = vadd.f32 %v94, %v95
    %v97 = vrot.slane %v96, 2
    %v98 = vadd.f32 %v96, %v97
    %v99 = vrot.slane %v98, 1
    %v100 = vadd.f32 %v98, %v99
    %v101 = vadd.f32 %v25, %v41
    %v102 = vrot.slane %v101, 4
    %v103 = vadd.f32 %v101, %v102
    %v104 = vrot.slane %v103, 2
    %v105 = vadd.f32 %v103, %v104
    %v106 = vrot.slane %v105, 1
    %v107 = vadd.f32 %v105, %v106
    %v108 = vadd.f32 %v26, %v42
    %v109 = vrot.slane %v108, 4
    %v110 = vadd.f32 %v108, %v109
    %v111 = vrot.slane %v110, 2
    %v112 = vadd.f32 %v110, %v111
    %v113 = vrot.slane %v112, 1
    %v114 = vadd.f32 %v112, %v113
    %v115 = vadd.f32 %v27, %v43
    %v116 = vrot.slane %v115, 4
    %v117 = vadd.f32 %v115, %v116
    %v118 = vrot.slane %v117, 2
    %v119 = vadd.f32 %v117, %v118
    %v120 = vrot.slane %v119, 1
    %v121 = vadd.f32 %v119, %v120
    %v122 = vadd.f32 %v28, %v44
    %v123 = vrot.slane %v122, 4
    %v124 = vadd.f32 %v122, %v123
    %v125 = vrot.slane %v124, 2
    %v126 = vadd.f32 %v124, %v125
    %v127 = vrot.slane %v126, 1
    %v128 = vadd.f32 %v126, %v127
    %v129 = vadd.f32 %v29, %v45
    %v130 = vrot.slane %v129, 4
    %v131 = vadd.f32 %v129, %v130
    %v132 = vrot.slane %v131, 2
    %v133 = vadd.f32 %v131, %v132
    %v134 = vrot.slane %v133, 1
    %v135 = vadd.f32 %v133, %v134
    %v136 = vadd.f32 %v30, %v46
    %v137 = vrot.slane %v136, 4
    %v138 = vadd.f32 %v136, %v137
    %v139 = vrot.slane %v138, 2
    %v140 = vadd.f32 %v138, %v139
    %v141 = vrot.slane %v140, 1
    %v142 = vadd.f32 %v140, %v141
    %v143 = vadd.f32 %v31, %v47
    %v144 = vrot.slane %v143, 4
    %v145 = vadd.f32 %v143, %v144
    %v146 = vrot.slane %v145, 2
    %v147 = vadd.f32 %v145, %v146
    %v148 = vrot.slane %v147, 1
    %v149 = vadd.f32 %v147, %v148
    %v150 = vadd.f32 %v32, %v48
    %v151 = vrot.slane %v150, 4
    %v152 = vadd.f32 %v150, %v151
    %v153 = vrot.slane %v152, 2
    %v154 = vadd.f32 %v152, %v153
    %v155 = vrot.slane %v154, 1
    %v156 = vadd.f32 %v154, %v155
    %v157 = vadd.f32 %v33, %v49
    %v158 = vrot.slane %v157, 4
    %v159 = vadd.f32 %v157, %v158
    %v160 = vrot.slane %v159, 2
    %v161 = vadd.f32 %v159, %v160
    %v162 = vrot.slane %v161, 1
    %v163 = vadd.f32 %v161, %v162
    %v164 = vadd.f32 %v34, %v50
    %v165 = vrot.slane %v164, 4
    %v166 = vadd.f32 %v164, %v165
    %v167 = vrot.slane %v166, 2
    %v168 = vadd.f32 %v166, %v167
    %v169 = vrot.slane %v168, 1
    %v170 = vadd.f32 %v168, %v169
    %v171 = vadd.f32 %v35, %v51
    %v172 = vrot.slane %v171, 4
    %v173 = vadd.f32 %v171, %v172
    %v174 = vrot.slane %v173, 2
    %v175 = vadd.f32 %v173, %v174
    %v176 = vrot.slane %v175, 1
    %v177 = vadd.f32 %v175, %v176
    %v178 = vadd.f32 %v36, %v52
    %v179 = vrot.slane %v178, 4
    %v180 = vadd.f32 %v178, %v179
    %v181 = vrot.slane %v180, 2
    %v182 = vadd.f32 %v180, %v181
    %v183 = vrot.slane %v182, 1
    %v184 = vadd.f32 %v182, %v183
    %v185 = vadd.f32 %v37, %v53
    %v186 = vrot.slane %v185, 4
    %v187 = vadd.f32 %v185, %v186
    %v188 = vrot.slane %v187, 2
    %v189 = vadd.f32 %v187, %v188
    %v190 = vrot.slane %v189, 1
    %v191 = vadd.f32 %v189, %v190
    %v192 = vadd.f32 %v38, %v54
    %v193 = vrot.slane %v192, 4
    %v194 = vadd.f32 %v192, %v193
    %v195 = vrot.slane %v194, 2
    %v196 = vadd.f32 %v194, %v195
    %v197 = vrot.slane %v196, 1
    %v198 = vadd.f32 %v196, %v197
    %v199 = vadd.f32 %v55, %v71
    %v200 = vrot.slane %v199, 4
    %v201 = vadd.f32 %v199, %v200
    %v202 = vrot.slane %v201, 2
    %v203 = vadd.f32 %v201, %v202
    %v204 = vrot.slane %v203, 1
    %v205 = vadd.f32 %v203, %v204
    %v206 = vadd.f32 %v56, %v72
    %v207 = vrot.slane %v206, 4
    %v208 = vadd.f32 %v206, %v207
    %v209 = vrot.slane %v208, 2
    %v210 = vadd.f32 %v208, %v209
    %v211 = vrot.slane %v210, 1
    %v212 = vadd.f32 %v210, %v211
    %v213 = vadd.f32 %v57, %v73
    %v214 = vrot.slane %v213, 4
    %v215 = vadd.f32 %v213, %v214
    %v216 = vrot.slane %v215, 2
    %v217 = vadd.f32 %v215, %v216
    %v218 = vrot.slane %v217, 1
    %v219 = vadd.f32 %v217, %v218
    %v220 = vadd.f32 %v58, %v74
    %v221 = vrot.slane %v220, 4
    %v222 = vadd.f32 %v220, %v221
    %v223 = vrot.slane %v222, 2
    %v224 = vadd.f32 %v222, %v223
    %v225 = vrot.slane %v224, 1
    %v226 = vadd.f32 %v224, %v225
    %v227 = vadd.f32 %v59, %v75
    %v228 = vrot.slane %v227, 4
    %v229 = vadd.f32 %v227, %v228
    %v230 = vrot.slane %v229, 2
    %v231 = vadd.f32 %v229, %v230
    %v232 = vrot.slane %v231, 1
    %v233 = vadd.f32 %v231, %v232
    %v234 = vadd.f32 %v60, %v76
    %v235 = vrot.slane %v234, 4
    %v236 = vadd.f32 %v234, %v235
    %v237 = vrot.slane %v236, 2
    %v238 = vadd.f32 %v236, %v237
    %v239 = vrot.slane %v238, 1
    %v240 = vadd.f32 %v238, %v239
    %v241 = vadd.f32 %v61, %v77
    %v242 = vrot.slane %v241, 4
    %v243 = vadd.f32 %v241, %v242
    %v244 = vrot.slane %v243, 2
    %v245 = vadd.f32 %v243, %v244
    %v246 = vrot.slane %v245, 1
    %v247 = vadd.f32 %v245, %v246
    %v248 = vadd.f32 %v62, %v78
    %v249 = vrot.slane %v248, 4
    %v250 = vadd.f32 %v248, %v249
    %v251 = vrot.slane %v250, 2
    %v252 = vadd.f32 %v250, %v251
    %v253 = vrot.slane %v252, 1
    %v254 = vadd.f32 %v252, %v253
    %v255 = vadd.f32 %v63, %v79
    %v256 = vrot.slane %v255, 4
    %v257 = vadd.f32 %v255, %v256
    %v258 = vrot.slane %v257, 2
    %v259 = vadd.f32 %v257, %v258
    %v260 = vrot.slane %v259, 1
    %v261 = vadd.f32 %v259, %v260
    %v262 = vadd.f32 %v64, %v80
    %v263 = vrot.slane %v262, 4
    %v264 = vadd.f32 %v262, %v263
    %v265 = vrot.slane %v264, 2
    %v266 = vadd.f32 %v264, %v265
    %v267 = vrot.slane %v266, 1
    %v268 = vadd.f32 %v266, %v267
    %v269 = vadd.f32 %v65, %v81
    %v270 = vrot.slane %v269, 4
    %v271 = vadd.f32 %v269, %v270
    %v272 = vrot.slane %v271, 2
    %v273 = vadd.f32 %v271, %v272
    %v274 = vrot.slane %v273, 1
    %v275 = vadd.f32 %v273, %v274
    %v276 = vadd.f32 %v66, %v82
    %v277 = vrot.slane %v276, 4
    %v278 = vadd.f32 %v276, %v277
    %v279 = vrot.slane %v278, 2
    %v280 = vadd.f32 %v278, %v279
    %v281 = vrot.slane %v280, 1
    %v282 = vadd.f32 %v280, %v281
    %v283 = vadd.f32 %v67, %v83
    %v284 = vrot.slane %v283, 4
    %v285 = vadd.f32 %v283, %v284
    %v286 = vrot.slane %v285, 2
    %v287 = vadd.f32 %v285, %v286
    %v288 = vrot.slane %v287, 1
    %v289 = vadd.f32 %v287, %v288
    %v290 = vadd.f32 %v68, %v84
    %v291 = vrot.slane %v290, 4
    %v292 = vadd.f32 %v290, %v291
    %v293 = vrot.slane %v292, 2
    %v294 = vadd.f32 %v292, %v293
    %v295 = vrot.slane %v294, 1
    %v296 = vadd.f32 %v294, %v295
    %v297 = vadd.f32 %v69, %v85
    %v298 = vrot.slane %v297, 4
    %v299 = vadd.f32 %v297, %v298
    %v300 = vrot.slane %v299, 2
    %v301 = vadd.f32 %v299, %v300
    %v302 = vrot.slane %v301, 1
    %v303 = vadd.f32 %v301, %v302
    %v304 = vadd.f32 %v70, %v86
    %v305 = vrot.slane %v304, 4
    %v306 = vadd.f32 %v304, %v305
    %v307 = vrot.slane %v306, 2
    %v308 = vadd.f32 %v306, %v307
    %v309 = vrot.slane %v308, 1
    %v310 = vadd.f32 %v308, %v309
    %v311 = vrcp.pop 16.0
    %v312 = vmul.f32 %v93, %v311
    %v313 = vmul.f32 %v100, %v311
    %v314 = vmul.f32 %v107, %v311
    %v315 = vmul.f32 %v114, %v311
    %v316 = vmul.f32 %v121, %v311
    %v317 = vmul.f32 %v128, %v311
    %v318 = vmul.f32 %v135, %v311
    %v319 = vmul.f32 %v142, %v311
    %v320 = vmul.f32 %v149, %v311
    %v321 = vmul.f32 %v156, %v311
    %v322 = vmul.f32 %v163, %v311
    %v323 = vmul.f32 %v170, %v311
    %v324 = vmul.f32 %v177, %v311
    %v325 = vmul.f32 %v184, %v311
    %v326 = vmul.f32 %v191, %v311
    %v327 = vmul.f32 %v198, %v311
    %v328 = vmul.f32 %v205, %v311
    %v329 = vmul.f32 %v212, %v311
    %v330 = vmul.f32 %v219, %v311
    %v331 = vmul.f32 %v226, %v311
    %v332 = vmul.f32 %v233, %v311
    %v333 = vmul.f32 %v240, %v311
    %v334 = vmul.f32 %v247, %v311
    %v335 = vmul.f32 %v254, %v311
    %v336 = vmul.f32 %v261, %v311
    %v337 = vmul.f32 %v268, %v311
    %v338 = vmul.f32 %v275, %v311
    %v339 = vmul.f32 %v282, %v311
    %v340 = vmul.f32 %v289, %v311
    %v341 = vmul.f32 %v296, %v311
    %v342 = vmul.f32 %v303, %v311
    %v343 = vmul.f32 %v310, %v311
    %v376 = vcombine.low %v312, %v313
    %v377 = vcombine.low %v314, %v315
    %v379 = vunpack.c.l.s4 1983009808
    %v380 = vunpack.c.0.s8 %v379
    %v381 = vlaneseq
    %v382 = vshrl.u32 %v381, 7
    %v383 = vsub.s32 %v380, %v382
    %v384 = vrot.slane %v376, %v383
    %v386 = vunpack.c.l.s4 1983009808
    %v387 = vunpack.c.0.s8 %v386
    %v388 = vlaneseq
    %v389 = vshrl.u32 %v388, 7
    %v390 = vsub.s32 %v387, %v389
    %v391 = vrot.slane %v377, %v390
    %v392 = vcombine.low %v384, %v391
    %v393 = vcombine.low %v316, %v317
    %v394 = vcombine.low %v318, %v319
    %v396 = vunpack.c.l.s4 1983009808
    %v397 = vunpack.c.0.s8 %v396
    %v398 = vlaneseq
    %v399 = vshrl.u32 %v398, 7
    %v400 = vsub.s32 %v397, %v399
    %v401 = vrot.slane %v393, %v400
    %v403 = vunpack.c.l.s4 1983009808
    %v404 = vunpack.c.0.s8 %v403
    %v405 = vlaneseq
    %v406 = vshrl.u32 %v405, 7
    %v407 = vsub.s32 %v404, %v406
    %v408 = vrot.slane %v394, %v407
    %v409 = vcombine.low %v401, %v408
    %v410 = vcombine.low %v320, %v321
    %v411 = vcombine.low %v322, %v323
    %v413 = vunpack.c.l.s4 1983009808
    %v414 = vunpack.c.0.s8 %v413
    %v415 = vlaneseq
    %v416 = vshrl.u32 %v415, 7
    %v417 = vsub.s32 %v414, %v416
    %v418 = vrot.slane %v410, %v417
    %v420 = vunpack.c.l.s4 1983009808
    %v421 = vunpack.c.0.s8 %v420
    %v422 = vlaneseq
    %v423 = vshrl.u32 %v422, 7
    %v424 = vsub.s32 %v421, %v423
    %v425 = vrot.slane %v411, %v424
    %v426 = vcombine.low %v418, %v425
    %v427 = vcombine.low %v324, %v325
    %v428 = vcombine.low %v326, %v327
    %v430 = vunpack.c.l.s4 1983009808
    %v431 = vunpack.c.0.s8 %v430
    %v432 = vlaneseq
    %v433 = vshrl.u32 %v432, 7
    %v434 = vsub.s32 %v431, %v433
    %v435 = vrot.slane %v427, %v434
    %v437 = vunpack.c.l.s4 1983009808
    %v438 = vunpack.c.0.s8 %v437
    %v439 = vlaneseq
    %v440 = vshrl.u32 %v439, 7
    %v441 = vsub.s32 %v438, %v440
    %v442 = vrot.slane %v428, %v441
    %v443 = vcombine.low %v435, %v442
    %v444 = vcombine.low %v328, %v329
    %v445 = vcombine.low %v330, %v331
    %v447 = vunpack.c.l.s4 1983009808
    %v448 = vunpack.c.0.s8 %v447
    %v449 = vlaneseq
    %v450 = vshrl.u32 %v449, 7
    %v451 = vsub.s32 %v448, %v450
    %v452 = vrot.slane %v444, %v451
    %v454 = vunpack.c.l.s4 1983009808
    %v455 = vunpack.c.0.s8 %v454
    %v456 = vlaneseq
    %v457 = vshrl.u32 %v456, 7
    %v458 = vsub.s32 %v455, %v457
    %v459 = vrot.slane %v445, %v458
    %v460 = vcombine.low %v452, %v459
    %v461 = vcombine.low %v332, %v333
    %v462 = vcombine.low %v334, %v335
    %v464 = vunpack.c.l.s4 1983009808
    %v465 = vunpack.c.0.s8 %v464
    %v466 = vlaneseq
    %v467 = vshrl.u32 %v466, 7
    %v468 = vsub.s32 %v465, %v467
    %v469 = vrot.slane %v461, %v468
    %v471 = vunpack.c.l.s4 1983009808
    %v472 = vunpack.c.0.s8 %v471
    %v473 = vlaneseq
    %v474 = vshrl.u32 %v473, 7
    %v475 = vsub.s32 %v472, %v474
    %v476 = vrot.slane %v462, %v475
    %v477 = vcombine.low %v469, %v476
    %v478 = vcombine.low %v336, %v337
    %v479 = vcombine.low %v338, %v339
    %v481 = vunpack.c.l.s4 1983009808
    %v482 = vunpack.c.0.s8 %v481
    %v483 = vlaneseq
    %v484 = vshrl.u32 %v483, 7
    %v485 = vsub.s32 %v482, %v484
    %v486 = vrot.slane %v478, %v485
    %v488 = vunpack.c.l.s4 1983009808
    %v489 = vunpack.c.0.s8 %v488
    %v490 = vlaneseq
    %v491 = vshrl.u32 %v490, 7
    %v492 = vsub.s32 %v489, %v491
    %v493 = vrot.slane %v479, %v492
    %v494 = vcombine.low %v486, %v493
    %v495 = vcombine.low %v340, %v341
    %v496 = vcombine.low %v342, %v343
    %v498 = vunpack.c.l.s4 1983009808
    %v499 = vunpack.c.0.s8 %v498
    %v500 = vlaneseq
    %v501 = vshrl.u32 %v500, 7
    %v502 = vsub.s32 %v499, %v501
    %v503 = vrot.slane %v495, %v502
    %v505 = vunpack.c.l.s4 1983009808
    %v506 = vunpack.c.0.s8 %v505
    %v507 = vlaneseq
    %v508 = vshrl.u32 %v507, 7
    %v509 = vsub.s32 %v506, %v508
    %v510 = vrot.slane %v496, %v509
    %v511 = vcombine.low %v503, %v510
    %vm512 = vcmask 1044484
    %v513 = vsel %vm512, %v392, %v392
    %vm514 = vcmask 1046534
    %v515 = vsel %vm514, %v392, %v513
    %v516 = vrot.slane %v460, 7
    %vm517 = vcmask 1041409
    %v518 = vsel %vm517, %v516, %v515
    %vm519 = vcmask 1043459
    %v520 = vsel %vm519, %v516, %v518
    %vm521 = vcmask 1045509
    %v522 = vsel %vm521, %v516, %v520
    %vm523 = vcmask 1047559
    %v524 = vsel %vm523, %v516, %v522
    %v525 = vsel %vm512, %v409, %v409
    %v526 = vsel %vm514, %v409, %v525
    %v527 = vrot.slane %v477, 7
    %v528 = vsel %vm517, %v527, %v526
    %v529 = vsel %vm519, %v527, %v528
    %v530 = vsel %vm521, %v527, %v529
    %v531 = vsel %vm523, %v527, %v530
    %v532 = vsel %vm512, %v426, %v426
    %v533 = vsel %vm514, %v426, %v532
    %v534 = vrot.slane %v494, 7
    %v535 = vsel %vm517, %v534, %v533
    %v536 = vsel %vm519, %v534, %v535
    %v537 = vsel %vm521, %v534, %v536
    %v538 = vsel %vm523, %v534, %v537
    %v539 = vsel %vm512, %v443, %v443
    %v540 = vsel %vm514, %v443, %v539
    %v541 = vrot.slane %v511, 7
    %v542 = vsel %vm517, %v541, %v540
    %v543 = vsel %vm519, %v541, %v542
    %v544 = vsel %vm521, %v541, %v543
    %v545 = vsel %vm523, %v541, %v544
    %550 = vst [vmem:[#allocation5] sm:$0xff] %v524
    %551 = vst [vmem:[#allocation5 + $0x8] sm:$0xff] %v531
    %552 = vst [vmem:[#allocation5 + $0x10] sm:$0xff] %v538
    %553 = vst [vmem:[#allocation5 + $0x18] sm:$0xff] %v545
    // Predicated region
    $region10: #{tpu_custom_call.1} parent=1 // pred_check
      _
    $region11: #{tpu_custom_call.1} parent=1 // pred_check_branch
      %555 = sbr.rel (0) target = $region13
    $region12: #{tpu_custom_call.1} parent=1 // pred_region
      %s557 = ssub.s32 512, 512
      %558 = vsyncadd [#allocation4], %s557
      %s560 = sshll.u32 [#allocation5], 4
      %s561 = int_to_ptr.vmem [resolvable:$true] %s560
      %563 = dma.vmem_to_hbm [thread:$0]  %s561, 512, %s1, [#allocation4]
    $region13: #{tpu_custom_call.1} parent=1 // pred_fallthru
      _
    // Predicated region
    $region14: #{tpu_custom_call.1} parent=1 // pred_check
      _
    $region15: #{tpu_custom_call.1} parent=1 // pred_check_branch
      %565 = sbr.rel (0) target = $region17
    $region16: #{tpu_custom_call.1} parent=1 // pred_region
      %566 = dma.done [#allocation4], 512
    $region17: #{tpu_custom_call.1} parent=1 // pred_fallthru
      _
    %567 = vsyncpa [#allocation3], 1
    %568 = vsyncpa [#allocation4], 1

</llo_original>
